<compile_context>
chip_gen: v6e
topology: v6e:2x2x1
jax: 0.10.0
libtpu: 0.0.40
codegen_flags: <defaults>
</compile_context>

<pallas_src>
import jax
import jax.numpy as jnp
from jax.experimental import pallas as pl
from jax.experimental.pallas import tpu as pltpu


def tile16_kernel(x_ref, o_ref):
    # x_ref: (8, 128) VMEM buffer  == the full flattened input (one f32 vreg)
    # o_ref: (16, 8, 128) VMEM buffer == the full flattened output (16 vregs)
    o_ref[...] = jnp.broadcast_to(x_ref[...][None], o_ref.shape)


def model_forward(x):
    """x: (1, 4, 8, 32) float32 -> (1, 64, 8, 32) float32."""
    N, C, H, W = x.shape
    assert (N, C, H, W) == (1, 4, 8, 32)

    rows, lanes = 8, 128                     # 1024 elems = one (8,128) f32 vreg
    x2d = x.reshape(rows, lanes)             # free wrapper reshape (contiguous)

    out3d = pl.pallas_call(
        tile16_kernel,
        out_shape=jax.ShapeDtypeStruct((16, rows, lanes), x.dtype),
        in_specs=[pl.BlockSpec(memory_space=pltpu.MemorySpace.VMEM)],
        out_specs=pl.BlockSpec(memory_space=pltpu.MemorySpace.VMEM),
        cost_estimate=pl.CostEstimate(
            flops=0, transcendentals=0, bytes_accessed=69632),
    )(x2d)

    # (16, 8, 128) row-major == 16 consecutive copies of the flattened input,
    # which is exactly tile(x, (1, 16, 1, 1)) in NCHW.
    return out3d.reshape(N, 16 * C, H, W)


if __name__ == "__main__":
    key = jax.random.PRNGKey(0)
    x = jax.random.normal(key, (1, 4, 8, 32), dtype=jnp.float32)

    y = model_forward(x)
    jax.block_until_ready(y)

    # Pure-JAX reference of the fixed semantics: 16 channel-wise copies of x.
    ref = jnp.tile(x, (1, 16, 1, 1))
    assert y.shape == (1, 64, 8, 32), y.shape
    assert y.dtype == x.dtype
    assert bool(jnp.array_equal(y, ref))

    print("KERNEL_OK")
</pallas_src>

<mosaic_0001>
module attributes {stable_mosaic.version = 11 : i64} {
  func.func @tile16_kernel(%arg0: memref<8x128xf32, #tpu.memory_space<vmem>>, %arg1: memref<16x8x128xf32, #tpu.memory_space<vmem>>) attributes {dimension_semantics = [], scalar_prefetch = 0 : i64, scratch_operands = 0 : i64, tpu.core_type = #tpu.core_type<tc>} {
    %c0 = arith.constant 0 : index
    %c0_0 = arith.constant 0 : index
    %0 = vector.load %arg0[%c0, %c0_0] : memref<8x128xf32, #tpu.memory_space<vmem>>, vector<8x128xf32>
    %1 = vector.shape_cast %0 : vector<8x128xf32> to vector<1x8x128xf32>
    %2 = vector.shape_cast %1 : vector<1x8x128xf32> to vector<1x8x128xf32>
    %3 = vector.broadcast %2 : vector<1x8x128xf32> to vector<16x8x128xf32>
    %c0_1 = arith.constant 0 : index
    %c0_2 = arith.constant 0 : index
    %c0_3 = arith.constant 0 : index
    %4 = vector.load %arg1[%c0_1, %c0_2, %c0_3] : memref<16x8x128xf32, #tpu.memory_space<vmem>>, vector<16x8x128xf32>
    tpu.vector_store %arg1[%c0_1, %c0_2, %c0_3], %3 {strides = array<i32>} : memref<16x8x128xf32, #tpu.memory_space<vmem>>, vector<16x8x128xf32>,
    return
  }
}

</mosaic_0001>

<llo_original>
// kernel: tpu_custom_call.1
$region0: #{tpu_custom_call.1}
  #allocation0 [shape = 'u32[]', space=smem, size = 0x4, offset = 0x4, fixed_abs, tag = 'smem constant byte address 0x4 - core index']
  #allocation1 [shape = 'u32[144,128]{1,0:T(1,128)}', space=vmem, size = 0x12000, scoped, tag = 'internal scratch']
  %s0 = inlined_call_operand.hbm [shape: f32[8,128], index: 0, kind: input, shape index: {}]
  %s1 = inlined_call_operand.hbm [shape: f32[16,8,128], index: 1, kind: output, shape index: {}]
  %s2 = sld [smem:[#allocation0]]
  $region18: #{tpu_custom_call.1} parent=0
    _
  %s4 = ssub.s32 1, %s2
  %s5 = scalar_select 0, %s4, %s2
  $region1: #{tpu_custom_call.1} parent=0
    #allocation2 [shape = 'u8[4096]{0}', space=vmem, size = 0x1000, scoped, tag = 'input window, operand 0, single buffered']
    #allocation3 [shape = 's32[1]{0}', space=sflag, size = 0x4, scoped, tag = 'scoped memory for tpu_custom_call.1']
    #allocation4 [shape = 's32[1]{0}', space=sflag, size = 0x4, scoped, tag = 'scoped memory for tpu_custom_call.1']
    #allocation5 [shape = 'u8[65536]{0}', space=vmem, size = 0x10000, scoped, tag = 'output window, operand 0, single buffered']
    %6 = vsyncpa [#allocation3], 0
    %7 = vsyncpa [#allocation4], 0
    // Predicated region
    $region2: #{tpu_custom_call.1} parent=1 // pred_check
      _
    $region3: #{tpu_custom_call.1} parent=1 // pred_check_branch
      %9 = sbr.rel (0) target = $region5
    $region4: #{tpu_custom_call.1} parent=1 // pred_region
      %s11 = ssub.s32 128, 128
      %12 = vsyncadd [#allocation3], %s11
      %s14 = sshll.u32 [#allocation2], 4
      %s15 = int_to_ptr.vmem [resolvable:$true] %s14
      %17 = dma.hbm_to_vmem [thread:$0]  %s0, 128, %s15, [#allocation3]
    $region5: #{tpu_custom_call.1} parent=1 // pred_fallthru
      _
    // Predicated region
    $region6: #{tpu_custom_call.1} parent=1 // pred_check
      _
    $region7: #{tpu_custom_call.1} parent=1 // pred_check_branch
      %19 = sbr.rel (0) target = $region9
    $region8: #{tpu_custom_call.1} parent=1 // pred_region
      %20 = dma.done [#allocation3], 128
    $region9: #{tpu_custom_call.1} parent=1 // pred_fallthru
      _
    %v21 = vld [vmem:[#allocation2] sm:$0xff]
    %22 = vst [vmem:[#allocation5] sm:$0xff] %v21
    %23 = vst [vmem:[#allocation5 + $0x8] sm:$0xff] %v21
    %24 = vst [vmem:[#allocation5 + $0x10] sm:$0xff] %v21
    %25 = vst [vmem:[#allocation5 + $0x18] sm:$0xff] %v21
    %26 = vst [vmem:[#allocation5 + $0x20] sm:$0xff] %v21
    %27 = vst [vmem:[#allocation5 + $0x28] sm:$0xff] %v21
    %28 = vst [vmem:[#allocation5 + $0x30] sm:$0xff] %v21
    %29 = vst [vmem:[#allocation5 + $0x38] sm:$0xff] %v21
    %30 = vst [vmem:[#allocation5 + $0x40] sm:$0xff] %v21
    %31 = vst [vmem:[#allocation5 + $0x48] sm:$0xff] %v21
    %32 = vst [vmem:[#allocation5 + $0x50] sm:$0xff] %v21
    %33 = vst [vmem:[#allocation5 + $0x58] sm:$0xff] %v21
    %34 = vst [vmem:[#allocation5 + $0x60] sm:$0xff] %v21
    %35 = vst [vmem:[#allocation5 + $0x68] sm:$0xff] %v21
    %36 = vst [vmem:[#allocation5 + $0x70] sm:$0xff] %v21
    %37 = vst [vmem:[#allocation5 + $0x78] sm:$0xff] %v21
    // Predicated region
    $region10: #{tpu_custom_call.1} parent=1 // pred_check
      _
    $region11: #{tpu_custom_call.1} parent=1 // pred_check_branch
      %39 = sbr.rel (0) target = $region13
    $region12: #{tpu_custom_call.1} parent=1 // pred_region
      %s41 = ssub.s32 2048, 2048
      %42 = vsyncadd [#allocation4], %s41
      %s43 = sshll.u32 [#allocation5], 4
      %s44 = int_to_ptr.vmem [resolvable:$true] %s43
      %49 = dma.vmem_to_hbm [thread:$0]  %s44, 2048, %s1, [#allocation4], 128, 128, 8
    $region13: #{tpu_custom_call.1} parent=1 // pred_fallthru
      _
    // Predicated region
    $region14: #{tpu_custom_call.1} parent=1 // pred_check
      _
    $region15: #{tpu_custom_call.1} parent=1 // pred_check_branch
      %51 = sbr.rel (0) target = $region17
    $region16: #{tpu_custom_call.1} parent=1 // pred_region
      %52 = dma.done [#allocation4], 2048
    $region17: #{tpu_custom_call.1} parent=1 // pred_fallthru
      _
    %53 = vsyncpa [#allocation3], 1
    %54 = vsyncpa [#allocation4], 1

</llo_original>
